<compile_context>
chip_gen: v5e
topology: v5e:2x2
jax: 0.10.0
libtpu: 0.0.40
codegen_flags: <defaults>
</compile_context>

<pallas_src>
import functools

import jax
import jax.numpy as jnp
from jax import lax
from jax.experimental import pallas as pl
from jax.experimental.pallas import tpu as pltpu

SUBLANE = 8
LANE = 128


def _round_up(n, m):
    return ((n + m - 1) // m) * m


# ----------------------------------------------------------------------------
# Pallas kernel (one batch tile of BT=8 rows per grid step)
# ----------------------------------------------------------------------------
def lstm_model_kernel(lengths_ref, x_ref, w_ih_ref, w_hh_ref, b_ref,
                      w1_ref, b1_ref, w2_ref, b2_ref, out_ref,
                      *, hidden: int, seq_len: int, batch_tile: int):
    """Block shapes (all VMEM):

    lengths_ref : (BT, 1)       int32   valid lengths (0 for padded rows)
    x_ref       : (T*BT, D)     bf16    time-major within the tile: row = t*BT + b
    w_ih_ref    : (D, 4H)       bf16    transposed PyTorch weight_ih_l0
    w_hh_ref    : (H, 4H)       bf16    transposed PyTorch weight_hh_l0
    b_ref       : (1, 4H)       f32     b_ih + b_hh
    w1_ref      : (H, hid)      bf16    transposed fc1 weight
    b1_ref      : (1, hid)      f32
    w2_ref      : (hid, C_pad)  bf16    transposed fc2 weight, lane-padded
    b2_ref      : (1, C_pad)    f32     fc2 bias, padded columns = -1e30
    out_ref     : (BT, C_pad)   f32     softmax class probabilities
    """
    H = hidden
    T = seq_len
    BT = batch_tile

    # ---- Hoisted input projection: ONE matmul for all timesteps (+ bias). ---
    x_proj = jnp.dot(x_ref[...], w_ih_ref[...],
                     preferred_element_type=jnp.float32) + b_ref[...]  # (T*BT,4H)

    w_hh = w_hh_ref[...]                                    # (H,4H) bf16, invariant

    # ---- Hoisted last-timestep selector (broadcast once, not per step). -----
    len_b = jnp.broadcast_to(lengths_ref[...] - 1, (BT, H))           # (BT,H) int32

    h = jnp.zeros((BT, H), jnp.float32)
    c = jnp.zeros((BT, H), jnp.float32)
    last = jnp.zeros((BT, H), jnp.float32)

    # ---- Fully-unrolled recurrence (T small & static). ----------------------
    # Per-step critical path: one MXU matmul + full-width EUP sigmoid/tanh +
    # a few VPU ops.  PyTorch gate order: [input, forget, cell, output].
    for t in range(T):
        rec = jnp.dot(h.astype(jnp.bfloat16), w_hh,
                      preferred_element_type=jnp.float32)             # (BT,4H)
        gates = x_proj[t * BT:(t + 1) * BT, :] + rec                  # aligned slice

        sig = jax.nn.sigmoid(gates)     # full-width EUP
        tnh = jnp.tanh(gates)           # full-width EUP
        i_g = sig[:, 0 * H:1 * H]
        f_g = sig[:, 1 * H:2 * H]
        g_g = tnh[:, 2 * H:3 * H]
        o_g = sig[:, 3 * H:4 * H]

        c = f_g * c + i_g * g_g
        h = o_g * jnp.tanh(c)
        last = jnp.where(len_b == t, h, last)   # keep h at t == length - 1

    # ---- Output MLP: Linear -> ReLU -> Linear -> Softmax(dim=-1). -----------
    z1 = jnp.maximum(
        jnp.dot(last.astype(jnp.bfloat16), w1_ref[...],
                preferred_element_type=jnp.float32) + b1_ref[...], 0.0)
    logits = (jnp.dot(z1.astype(jnp.bfloat16), w2_ref[...],
                      preferred_element_type=jnp.float32) + b2_ref[...])
    # Padded columns carry bias -1e30 -> exp()==0, so softmax over the full
    # 128-lane tile equals softmax over the real classes.
    m = jnp.max(logits, axis=-1, keepdims=True)
    e = jnp.exp(logits - m)
    out_ref[...] = e / jnp.sum(e, axis=-1, keepdims=True)   # exact normalization


# ----------------------------------------------------------------------------
# One-time parameter preparation (transpose / combine / cast / lane-pad done
# OUTSIDE the per-call forward).
# ----------------------------------------------------------------------------
def prepare_kernel_params(params):
    H = params["w_hh"].shape[1]
    C = params["w2"].shape[0]
    C_pad = _round_up(max(C, LANE), LANE)

    w2_t = jnp.pad(params["w2"].T.astype(jnp.bfloat16),
                   ((0, 0), (0, C_pad - C)))                          # (hid, C_pad)
    b2 = jnp.full((1, C_pad), -1e30, jnp.float32).at[0, :C].set(
        params["b2"].astype(jnp.float32))                             # (1, C_pad)

    return {
        "w_ih_t": params["w_ih"].T.astype(jnp.bfloat16),              # (D, 4H)
        "w_hh_t": params["w_hh"].T.astype(jnp.bfloat16),              # (H, 4H)
        "b": (params["b_ih"] + params["b_hh"]).reshape(1, 4 * H)
             .astype(jnp.float32),                                    # (1, 4H)
        "w1_t": params["w1"].T.astype(jnp.bfloat16),                  # (H, hid)
        "b1": params["b1"].reshape(1, -1).astype(jnp.float32),
        "w2_t": w2_t,
        "b2": b2,
    }


# ----------------------------------------------------------------------------
# Forward wrapper
# ----------------------------------------------------------------------------
@functools.partial(jax.jit, static_argnames=("num_classes",))
def lstm_model_forward(x, lengths, kp, *, num_classes):
    """x: (B, T, D) f32, lengths: (B,) int32 -> (B, num_classes) f32."""
    B, T, D = x.shape
    H = kp["w_hh_t"].shape[0]
    HID = kp["w1_t"].shape[1]
    C_pad = kp["w2_t"].shape[1]

    BT = SUBLANE
    B_pad = _round_up(max(B, BT), BT)
    n_tiles = B_pad // BT

    # Pad batch to a sublane multiple; padded rows get length 0 (never selected).
    x_pad = jnp.zeros((B_pad, T, D), jnp.float32).at[:B].set(x.astype(jnp.float32))
    lengths_pad = (jnp.zeros((B_pad, 1), jnp.int32)
                   .at[:B, 0].set(lengths.astype(jnp.int32)))

    # Batch-tile-major, time-major layout: (n_tiles, T*BT, D) so every per-step
    # kernel slice is sublane-aligned and the grid axis maps to contiguous blocks.
    x_tiles = (x_pad.reshape(n_tiles, BT, T, D)
               .transpose(0, 2, 1, 3)
               .reshape(n_tiles, T * BT, D)
               .astype(jnp.bfloat16))

    kernel = functools.partial(lstm_model_kernel,
                               hidden=H, seq_len=T, batch_tile=BT)

    out_full = pl.pallas_call(
        kernel,
        out_shape=jax.ShapeDtypeStruct((B_pad, C_pad), jnp.float32),
        grid=(n_tiles,),
        in_specs=[
            pl.BlockSpec((BT, 1), lambda i: (i, 0)),               # lengths
            pl.BlockSpec((None, T * BT, D), lambda i: (i, 0, 0)),  # x batch tile
            pl.BlockSpec((D, 4 * H), lambda i: (0, 0)),            # w_ih^T
            pl.BlockSpec((H, 4 * H), lambda i: (0, 0)),            # w_hh^T
            pl.BlockSpec((1, 4 * H), lambda i: (0, 0)),            # b_ih + b_hh
            pl.BlockSpec((H, HID), lambda i: (0, 0)),              # fc1 w^T
            pl.BlockSpec((1, HID), lambda i: (0, 0)),              # fc1 b
            pl.BlockSpec((HID, C_pad), lambda i: (0, 0)),          # fc2 w^T (padded)
            pl.BlockSpec((1, C_pad), lambda i: (0, 0)),            # fc2 b  (padded)
        ],
        out_specs=pl.BlockSpec((BT, C_pad), lambda i: (i, 0)),
        compiler_params=pltpu.CompilerParams(
            dimension_semantics=("parallel",)),                    # v7x: 2nd TC
    )(lengths_pad, x_tiles, kp["w_ih_t"], kp["w_hh_t"], kp["b"],
      kp["w1_t"], kp["b1"], kp["w2_t"], kp["b2"])

    return out_full[:B, :num_classes]


# ----------------------------------------------------------------------------
# Pure-JAX f32 reference (mirrors the PyTorch forward) for correctness check
# ----------------------------------------------------------------------------
def reference_forward(x, lengths, p):
    B, T, D = x.shape
    H = p["w_hh"].shape[1]

    def step(carry, x_t):
        h, c = carry
        gates = x_t @ p["w_ih"].T + h @ p["w_hh"].T + p["b_ih"] + p["b_hh"]
        i_g, f_g, g_g, o_g = jnp.split(gates, 4, axis=-1)
        i_g = jax.nn.sigmoid(i_g)
        f_g = jax.nn.sigmoid(f_g)
        g_g = jnp.tanh(g_g)
        o_g = jax.nn.sigmoid(o_g)
        c = f_g * c + i_g * g_g
        h = o_g * jnp.tanh(c)
        return (h, c), h

    init = (jnp.zeros((B, H), jnp.float32), jnp.zeros((B, H), jnp.float32))
    _, hs = lax.scan(step, init, jnp.swapaxes(x, 0, 1))               # (T,B,H)
    last = hs[lengths - 1, jnp.arange(B)]                             # (B, H)
    z1 = jax.nn.relu(last @ p["w1"].T + p["b1"])
    logits = z1 @ p["w2"].T + p["b2"]
    return jax.nn.softmax(logits, axis=-1)


def init_params(key, input_size, lstm_dim, hidden_dim, num_classes):
    ks = jax.random.split(key, 8)
    k_lstm = 1.0 / jnp.sqrt(lstm_dim)

    def u(k, shape, scale):
        return jax.random.uniform(k, shape, jnp.float32, -scale, scale)

    return {
        "w_ih": u(ks[0], (4 * lstm_dim, input_size), k_lstm),
        "w_hh": u(ks[1], (4 * lstm_dim, lstm_dim), k_lstm),
        "b_ih": u(ks[2], (4 * lstm_dim,), k_lstm),
        "b_hh": u(ks[3], (4 * lstm_dim,), k_lstm),
        "w1": u(ks[4], (hidden_dim, lstm_dim), 1.0 / jnp.sqrt(lstm_dim)),
        "b1": u(ks[5], (hidden_dim,), 1.0 / jnp.sqrt(lstm_dim)),
        "w2": u(ks[6], (num_classes, hidden_dim), 1.0 / jnp.sqrt(hidden_dim)),
        "b2": u(ks[7], (num_classes,), 1.0 / jnp.sqrt(hidden_dim)),
    }


if __name__ == "__main__":
    # Small, module-consistent shapes.
    B, T, D = 2, 8, 16          # batch, time, input_size
    LSTM_DIM, HIDDEN, C = 32, 64, 8

    key = jax.random.PRNGKey(0)
    k_x, k_p = jax.random.split(key)
    x = jax.random.normal(k_x, (B, T, D), jnp.float32)
    lengths = jnp.array([T, 5], dtype=jnp.int32)   # valid lengths in [1, T]
    params = init_params(k_p, D, LSTM_DIM, HIDDEN, C)
    kparams = prepare_kernel_params(params)        # one-time layout/dtype prep

    out = lstm_model_forward(x, lengths, kparams, num_classes=C)
    out = jax.block_until_ready(out)

    ref = reference_forward(x, lengths, params)
    assert out.shape == (B, C)
    # bf16 MXU operands -> loosened tolerances vs f32 reference.
    assert jnp.allclose(out, ref, atol=2e-2, rtol=2e-2), (out, ref)
    # Exact softmax normalization (no approx reciprocal) -> tight sum-to-1.
    assert jnp.allclose(jnp.sum(out, axis=-1), 1.0, atol=1e-4)

    print("KERNEL_OK")
</pallas_src>

<mosaic_0001>
module attributes {stable_mosaic.version = 11 : i64} {
  func.func @lstm_model_kernel(%arg0: i32, %arg1: memref<8x1xi32, #tpu.memory_space<vmem>>, %arg2: memref<1x64x16xbf16, #tpu.memory_space<vmem>>, %arg3: memref<16x128xbf16, #tpu.memory_space<vmem>>, %arg4: memref<32x128xbf16, #tpu.memory_space<vmem>>, %arg5: memref<1x128xf32, #tpu.memory_space<vmem>>, %arg6: memref<32x64xbf16, #tpu.memory_space<vmem>>, %arg7: memref<1x64xf32, #tpu.memory_space<vmem>>, %arg8: memref<64x128xbf16, #tpu.memory_space<vmem>>, %arg9: memref<1x128xf32, #tpu.memory_space<vmem>>, %arg10: memref<8x128xf32, #tpu.memory_space<vmem>>) attributes {dimension_semantics = [#tpu.dimension_semantics<parallel>], iteration_bounds = array<i64: 1>, scalar_prefetch = 0 : i64, scratch_operands = 0 : i64, tpu.core_type = #tpu.core_type<tc>, window_params = [{transform_indices = @transform_0, window_bounds = array<i64: 8, 1>}, {transform_indices = @transform_1, window_bounds = array<i64: 1, 64, 16>}, {pipeline_mode = #tpu.pipeline_mode<synchronous>, transform_indices = @transform_2, window_bounds = array<i64: 16, 128>}, {pipeline_mode = #tpu.pipeline_mode<synchronous>, transform_indices = @transform_3, window_bounds = array<i64: 32, 128>}, {pipeline_mode = #tpu.pipeline_mode<synchronous>, transform_indices = @transform_4, window_bounds = array<i64: 1, 128>}, {pipeline_mode = #tpu.pipeline_mode<synchronous>, transform_indices = @transform_5, window_bounds = array<i64: 32, 64>}, {pipeline_mode = #tpu.pipeline_mode<synchronous>, transform_indices = @transform_6, window_bounds = array<i64: 1, 64>}, {pipeline_mode = #tpu.pipeline_mode<synchronous>, transform_indices = @transform_7, window_bounds = array<i64: 64, 128>}, {pipeline_mode = #tpu.pipeline_mode<synchronous>, transform_indices = @transform_8, window_bounds = array<i64: 1, 128>}, {transform_indices = @transform_9, window_bounds = array<i64: 8, 128>}]} {
    %c0 = arith.constant 0 : index
    %c0_0 = arith.constant 0 : index
    %c0_1 = arith.constant 0 : index
    %0 = vector.load %arg2[%c0, %c0_0, %c0_1] : memref<1x64x16xbf16, #tpu.memory_space<vmem>>, vector<1x64x16xbf16>
    %1 = vector.shape_cast %0 : vector<1x64x16xbf16> to vector<64x16xbf16>
    %c0_2 = arith.constant 0 : index
    %c0_3 = arith.constant 0 : index
    %2 = vector.load %arg3[%c0_2, %c0_3] : memref<16x128xbf16, #tpu.memory_space<vmem>>, vector<16x128xbf16>
    %cst = arith.constant dense<0.000000e+00> : vector<64x128xf32>
    %3 = tpu.matmul %1, %2, %cst {dimension_numbers = #tpu.dot_dimension_numbers<[1], [0], [0], [1], [0, 0, 1, 1], [], []>} : vector<64x16xbf16>, vector<16x128xbf16>, vector<64x128xf32> -> vector<64x128xf32>
    %c0_4 = arith.constant 0 : index
    %c0_5 = arith.constant 0 : index
    %4 = vector.load %arg5[%c0_4, %c0_5] : memref<1x128xf32, #tpu.memory_space<vmem>>, vector<1x128xf32>
    %5 = vector.broadcast %4 : vector<1x128xf32> to vector<64x128xf32>
    %6 = arith.addf %3, %5 : vector<64x128xf32>
    %c0_6 = arith.constant 0 : index
    %c0_7 = arith.constant 0 : index
    %7 = vector.load %arg4[%c0_6, %c0_7] : memref<32x128xbf16, #tpu.memory_space<vmem>>, vector<32x128xbf16>
    %c0_8 = arith.constant 0 : index
    %c0_9 = arith.constant 0 : index
    %8 = vector.load %arg1[%c0_8, %c0_9] : memref<8x1xi32, #tpu.memory_space<vmem>>, vector<8x1xi32>
    %c1_i32 = arith.constant 1 : i32
    %9 = vector.broadcast %c1_i32 : i32 to vector<8x1xi32>
    %10 = arith.subi %8, %9 : vector<8x1xi32>
    %11 = vector.shape_cast %10 : vector<8x1xi32> to vector<8x1xi32>
    %12 = vector.broadcast %11 : vector<8x1xi32> to vector<8x32xi32>
    %cst_10 = arith.constant 0.000000e+00 : f32
    %13 = vector.broadcast %cst_10 : f32 to vector<8x32xf32>
    %cst_11 = arith.constant 0.000000e+00 : f32
    %14 = vector.broadcast %cst_11 : f32 to vector<8x32xf32>
    %cst_12 = arith.constant 0.000000e+00 : f32
    %15 = vector.broadcast %cst_12 : f32 to vector<8x32xf32>
    %16 = arith.truncf %13 : vector<8x32xf32> to vector<8x32xbf16>
    %cst_13 = arith.constant dense<0.000000e+00> : vector<8x128xf32>
    %17 = tpu.matmul %16, %7, %cst_13 {dimension_numbers = #tpu.dot_dimension_numbers<[1], [0], [0], [1], [0, 0, 1, 1], [], []>} : vector<8x32xbf16>, vector<32x128xbf16>, vector<8x128xf32> -> vector<8x128xf32>
    %18 = vector.extract_strided_slice %6 {offsets = [0, 0], sizes = [8, 128], strides = [1, 1]} : vector<64x128xf32> to vector<8x128xf32>
    %19 = arith.addf %18, %17 : vector<8x128xf32>
    %20 = arith.negf %19 : vector<8x128xf32>
    %21 = math.exp %20 : vector<8x128xf32>
    %cst_14 = arith.constant 1.000000e+00 : f32
    %22 = vector.broadcast %cst_14 : f32 to vector<8x128xf32>
    %23 = arith.addf %22, %21 : vector<8x128xf32>
    %24 = arith.divf %22, %23 : vector<8x128xf32>
    %25 = math.tanh %19 : vector<8x128xf32>
    %26 = vector.extract_strided_slice %24 {offsets = [0, 0], sizes = [8, 32], strides = [1, 1]} : vector<8x128xf32> to vector<8x32xf32>
    %27 = vector.extract_strided_slice %24 {offsets = [0, 32], sizes = [8, 32], strides = [1, 1]} : vector<8x128xf32> to vector<8x32xf32>
    %28 = vector.extract_strided_slice %25 {offsets = [0, 64], sizes = [8, 32], strides = [1, 1]} : vector<8x128xf32> to vector<8x32xf32>
    %29 = vector.extract_strided_slice %24 {offsets = [0, 96], sizes = [8, 32], strides = [1, 1]} : vector<8x128xf32> to vector<8x32xf32>
    %30 = arith.mulf %27, %14 : vector<8x32xf32>
    %31 = arith.mulf %26, %28 : vector<8x32xf32>
    %32 = arith.addf %30, %31 : vector<8x32xf32>
    %33 = math.tanh %32 : vector<8x32xf32>
    %34 = arith.mulf %29, %33 : vector<8x32xf32>
    %c0_i32 = arith.constant 0 : i32
    %35 = vector.broadcast %c0_i32 : i32 to vector<8x32xi32>
    %36 = arith.cmpi eq, %12, %35 : vector<8x32xi32>
    %37 = arith.select %36, %34, %15 : vector<8x32xi1>, vector<8x32xf32>
    %38 = arith.truncf %34 : vector<8x32xf32> to vector<8x32xbf16>
    %cst_15 = arith.constant dense<0.000000e+00> : vector<8x128xf32>
    %39 = tpu.matmul %38, %7, %cst_15 {dimension_numbers = #tpu.dot_dimension_numbers<[1], [0], [0], [1], [0, 0, 1, 1], [], []>} : vector<8x32xbf16>, vector<32x128xbf16>, vector<8x128xf32> -> vector<8x128xf32>
    %40 = vector.extract_strided_slice %6 {offsets = [8, 0], sizes = [8, 128], strides = [1, 1]} : vector<64x128xf32> to vector<8x128xf32>
    %41 = arith.addf %40, %39 : vector<8x128xf32>
    %42 = arith.negf %41 : vector<8x128xf32>
    %43 = math.exp %42 : vector<8x128xf32>
    %cst_16 = arith.constant 1.000000e+00 : f32
    %44 = vector.broadcast %cst_16 : f32 to vector<8x128xf32>
    %45 = arith.addf %44, %43 : vector<8x128xf32>
    %46 = arith.divf %44, %45 : vector<8x128xf32>
    %47 = math.tanh %41 : vector<8x128xf32>
    %48 = vector.extract_strided_slice %46 {offsets = [0, 0], sizes = [8, 32], strides = [1, 1]} : vector<8x128xf32> to vector<8x32xf32>
    %49 = vector.extract_strided_slice %46 {offsets = [0, 32], sizes = [8, 32], strides = [1, 1]} : vector<8x128xf32> to vector<8x32xf32>
    %50 = vector.extract_strided_slice %47 {offsets = [0, 64], sizes = [8, 32], strides = [1, 1]} : vector<8x128xf32> to vector<8x32xf32>
    %51 = vector.extract_strided_slice %46 {offsets = [0, 96], sizes = [8, 32], strides = [1, 1]} : vector<8x128xf32> to vector<8x32xf32>
    %52 = arith.mulf %49, %32 : vector<8x32xf32>
    %53 = arith.mulf %48, %50 : vector<8x32xf32>
    %54 = arith.addf %52, %53 : vector<8x32xf32>
    %55 = math.tanh %54 : vector<8x32xf32>
    %56 = arith.mulf %51, %55 : vector<8x32xf32>
    %c1_i32_17 = arith.constant 1 : i32
    %57 = vector.broadcast %c1_i32_17 : i32 to vector<8x32xi32>
    %58 = arith.cmpi eq, %12, %57 : vector<8x32xi32>
    %59 = arith.select %58, %56, %37 : vector<8x32xi1>, vector<8x32xf32>
    %60 = arith.truncf %56 : vector<8x32xf32> to vector<8x32xbf16>
    %cst_18 = arith.constant dense<0.000000e+00> : vector<8x128xf32>
    %61 = tpu.matmul %60, %7, %cst_18 {dimension_numbers = #tpu.dot_dimension_numbers<[1], [0], [0], [1], [0, 0, 1, 1], [], []>} : vector<8x32xbf16>, vector<32x128xbf16>, vector<8x128xf32> -> vector<8x128xf32>
    %62 = vector.extract_strided_slice %6 {offsets = [16, 0], sizes = [8, 128], strides = [1, 1]} : vector<64x128xf32> to vector<8x128xf32>
    %63 = arith.addf %62, %61 : vector<8x128xf32>
    %64 = arith.negf %63 : vector<8x128xf32>
    %65 = math.exp %64 : vector<8x128xf32>
    %cst_19 = arith.constant 1.000000e+00 : f32
    %66 = vector.broadcast %cst_19 : f32 to vector<8x128xf32>
    %67 = arith.addf %66, %65 : vector<8x128xf32>
    %68 = arith.divf %66, %67 : vector<8x128xf32>
    %69 = math.tanh %63 : vector<8x128xf32>
    %70 = vector.extract_strided_slice %68 {offsets = [0, 0], sizes = [8, 32], strides = [1, 1]} : vector<8x128xf32> to vector<8x32xf32>
    %71 = vector.extract_strided_slice %68 {offsets = [0, 32], sizes = [8, 32], strides = [1, 1]} : vector<8x128xf32> to vector<8x32xf32>
    %72 = vector.extract_strided_slice %69 {offsets = [0, 64], sizes = [8, 32], strides = [1, 1]} : vector<8x128xf32> to vector<8x32xf32>
    %73 = vector.extract_strided_slice %68 {offsets = [0, 96], sizes = [8, 32], strides = [1, 1]} : vector<8x128xf32> to vector<8x32xf32>
    %74 = arith.mulf %71, %54 : vector<8x32xf32>
    %75 = arith.mulf %70, %72 : vector<8x32xf32>
    %76 = arith.addf %74, %75 : vector<8x32xf32>
    %77 = math.tanh %76 : vector<8x32xf32>
    %78 = arith.mulf %73, %77 : vector<8x32xf32>
    %c2_i32 = arith.constant 2 : i32
    %79 = vector.broadcast %c2_i32 : i32 to vector<8x32xi32>
    %80 = arith.cmpi eq, %12, %79 : vector<8x32xi32>
    %81 = arith.select %80, %78, %59 : vector<8x32xi1>, vector<8x32xf32>
    %82 = arith.truncf %78 : vector<8x32xf32> to vector<8x32xbf16>
    %cst_20 = arith.constant dense<0.000000e+00> : vector<8x128xf32>
    %83 = tpu.matmul %82, %7, %cst_20 {dimension_numbers = #tpu.dot_dimension_numbers<[1], [0], [0], [1], [0, 0, 1, 1], [], []>} : vector<8x32xbf16>, vector<32x128xbf16>, vector<8x128xf32> -> vector<8x128xf32>
    %84 = vector.extract_strided_slice %6 {offsets = [24, 0], sizes = [8, 128], strides = [1, 1]} : vector<64x128xf32> to vector<8x128xf32>
    %85 = arith.addf %84, %83 : vector<8x128xf32>
    %86 = arith.negf %85 : vector<8x128xf32>
    %87 = math.exp %86 : vector<8x128xf32>
    %cst_21 = arith.constant 1.000000e+00 : f32
    %88 = vector.broadcast %cst_21 : f32 to vector<8x128xf32>
    %89 = arith.addf %88, %87 : vector<8x128xf32>
    %90 = arith.divf %88, %89 : vector<8x128xf32>
    %91 = math.tanh %85 : vector<8x128xf32>
    %92 = vector.extract_strided_slice %90 {offsets = [0, 0], sizes = [8, 32], strides = [1, 1]} : vector<8x128xf32> to vector<8x32xf32>
    %93 = vector.extract_strided_slice %90 {offsets = [0, 32], sizes = [8, 32], strides = [1, 1]} : vector<8x128xf32> to vector<8x32xf32>
    %94 = vector.extract_strided_slice %91 {offsets = [0, 64], sizes = [8, 32], strides = [1, 1]} : vector<8x128xf32> to vector<8x32xf32>
    %95 = vector.extract_strided_slice %90 {offsets = [0, 96], sizes = [8, 32], strides = [1, 1]} : vector<8x128xf32> to vector<8x32xf32>
    %96 = arith.mulf %93, %76 : vector<8x32xf32>
    %97 = arith.mulf %92, %94 : vector<8x32xf32>
    %98 = arith.addf %96, %97 : vector<8x32xf32>
    %99 = math.tanh %98 : vector<8x32xf32>
    %100 = arith.mulf %95, %99 : vector<8x32xf32>
    %c3_i32 = arith.constant 3 : i32
    %101 = vector.broadcast %c3_i32 : i32 to vector<8x32xi32>
    %102 = arith.cmpi eq, %12, %101 : vector<8x32xi32>
    %103 = arith.select %102, %100, %81 : vector<8x32xi1>, vector<8x32xf32>
    %104 = arith.truncf %100 : vector<8x32xf32> to vector<8x32xbf16>
    %cst_22 = arith.constant dense<0.000000e+00> : vector<8x128xf32>
    %105 = tpu.matmul %104, %7, %cst_22 {dimension_numbers = #tpu.dot_dimension_numbers<[1], [0], [0], [1], [0, 0, 1, 1], [], []>} : vector<8x32xbf16>, vector<32x128xbf16>, vector<8x128xf32> -> vector<8x128xf32>
    %106 = vector.extract_strided_slice %6 {offsets = [32, 0], sizes = [8, 128], strides = [1, 1]} : vector<64x128xf32> to vector<8x128xf32>
    %107 = arith.addf %106, %105 : vector<8x128xf32>
    %108 = arith.negf %107 : vector<8x128xf32>
    %109 = math.exp %108 : vector<8x128xf32>
    %cst_23 = arith.constant 1.000000e+00 : f32
    %110 = vector.broadcast %cst_23 : f32 to vector<8x128xf32>
    %111 = arith.addf %110, %109 : vector<8x128xf32>
    %112 = arith.divf %110, %111 : vector<8x128xf32>
    %113 = math.tanh %107 : vector<8x128xf32>
    %114 = vector.extract_strided_slice %112 {offsets = [0, 0], sizes = [8, 32], strides = [1, 1]} : vector<8x128xf32> to vector<8x32xf32>
    %115 = vector.extract_strided_slice %112 {offsets = [0, 32], sizes = [8, 32], strides = [1, 1]} : vector<8x128xf32> to vector<8x32xf32>
    %116 = vector.extract_strided_slice %113 {offsets = [0, 64], sizes = [8, 32], strides = [1, 1]} : vector<8x128xf32> to vector<8x32xf32>
    %117 = vector.extract_strided_slice %112 {offsets = [0, 96], sizes = [8, 32], strides = [1, 1]} : vector<8x128xf32> to vector<8x32xf32>
    %118 = arith.mulf %115, %98 : vector<8x32xf32>
    %119 = arith.mulf %114, %116 : vector<8x32xf32>
    %120 = arith.addf %118, %119 : vector<8x32xf32>
    %121 = math.tanh %120 : vector<8x32xf32>
    %122 = arith.mulf %117, %121 : vector<8x32xf32>
    %c4_i32 = arith.constant 4 : i32
    %123 = vector.broadcast %c4_i32 : i32 to vector<8x32xi32>
    %124 = arith.cmpi eq, %12, %123 : vector<8x32xi32>
    %125 = arith.select %124, %122, %103 : vector<8x32xi1>, vector<8x32xf32>
    %126 = arith.truncf %122 : vector<8x32xf32> to vector<8x32xbf16>
    %cst_24 = arith.constant dense<0.000000e+00> : vector<8x128xf32>
    %127 = tpu.matmul %126, %7, %cst_24 {dimension_numbers = #tpu.dot_dimension_numbers<[1], [0], [0], [1], [0, 0, 1, 1], [], []>} : vector<8x32xbf16>, vector<32x128xbf16>, vector<8x128xf32> -> vector<8x128xf32>
    %128 = vector.extract_strided_slice %6 {offsets = [40, 0], sizes = [8, 128], strides = [1, 1]} : vector<64x128xf32> to vector<8x128xf32>
    %129 = arith.addf %128, %127 : vector<8x128xf32>
    %130 = arith.negf %129 : vector<8x128xf32>
    %131 = math.exp %130 : vector<8x128xf32>
    %cst_25 = arith.constant 1.000000e+00 : f32
    %132 = vector.broadcast %cst_25 : f32 to vector<8x128xf32>
    %133 = arith.addf %132, %131 : vector<8x128xf32>
    %134 = arith.divf %132, %133 : vector<8x128xf32>
    %135 = math.tanh %129 : vector<8x128xf32>
    %136 = vector.extract_strided_slice %134 {offsets = [0, 0], sizes = [8, 32], strides = [1, 1]} : vector<8x128xf32> to vector<8x32xf32>
    %137 = vector.extract_strided_slice %134 {offsets = [0, 32], sizes = [8, 32], strides = [1, 1]} : vector<8x128xf32> to vector<8x32xf32>
    %138 = vector.extract_strided_slice %135 {offsets = [0, 64], sizes = [8, 32], strides = [1, 1]} : vector<8x128xf32> to vector<8x32xf32>
    %139 = vector.extract_strided_slice %134 {offsets = [0, 96], sizes = [8, 32], strides = [1, 1]} : vector<8x128xf32> to vector<8x32xf32>
    %140 = arith.mulf %137, %120 : vector<8x32xf32>
    %141 = arith.mulf %136, %138 : vector<8x32xf32>
    %142 = arith.addf %140, %141 : vector<8x32xf32>
    %143 = math.tanh %142 : vector<8x32xf32>
    %144 = arith.mulf %139, %143 : vector<8x32xf32>
    %c5_i32 = arith.constant 5 : i32
    %145 = vector.broadcast %c5_i32 : i32 to vector<8x32xi32>
    %146 = arith.cmpi eq, %12, %145 : vector<8x32xi32>
    %147 = arith.select %146, %144, %125 : vector<8x32xi1>, vector<8x32xf32>
    %148 = arith.truncf %144 : vector<8x32xf32> to vector<8x32xbf16>
    %cst_26 = arith.constant dense<0.000000e+00> : vector<8x128xf32>
    %149 = tpu.matmul %148, %7, %cst_26 {dimension_numbers = #tpu.dot_dimension_numbers<[1], [0], [0], [1], [0, 0, 1, 1], [], []>} : vector<8x32xbf16>, vector<32x128xbf16>, vector<8x128xf32> -> vector<8x128xf32>
    %150 = vector.extract_strided_slice %6 {offsets = [48, 0], sizes = [8, 128], strides = [1, 1]} : vector<64x128xf32> to vector<8x128xf32>
    %151 = arith.addf %150, %149 : vector<8x128xf32>
    %152 = arith.negf %151 : vector<8x128xf32>
    %153 = math.exp %152 : vector<8x128xf32>
    %cst_27 = arith.constant 1.000000e+00 : f32
    %154 = vector.broadcast %cst_27 : f32 to vector<8x128xf32>
    %155 = arith.addf %154, %153 : vector<8x128xf32>
    %156 = arith.divf %154, %155 : vector<8x128xf32>
    %157 = math.tanh %151 : vector<8x128xf32>
    %158 = vector.extract_strided_slice %156 {offsets = [0, 0], sizes = [8, 32], strides = [1, 1]} : vector<8x128xf32> to vector<8x32xf32>
    %159 = vector.extract_strided_slice %156 {offsets = [0, 32], sizes = [8, 32], strides = [1, 1]} : vector<8x128xf32> to vector<8x32xf32>
    %160 = vector.extract_strided_slice %157 {offsets = [0, 64], sizes = [8, 32], strides = [1, 1]} : vector<8x128xf32> to vector<8x32xf32>
    %161 = vector.extract_strided_slice %156 {offsets = [0, 96], sizes = [8, 32], strides = [1, 1]} : vector<8x128xf32> to vector<8x32xf32>
    %162 = arith.mulf %159, %142 : vector<8x32xf32>
    %163 = arith.mulf %158, %160 : vector<8x32xf32>
    %164 = arith.addf %162, %163 : vector<8x32xf32>
    %165 = math.tanh %164 : vector<8x32xf32>
    %166 = arith.mulf %161, %165 : vector<8x32xf32>
    %c6_i32 = arith.constant 6 : i32
    %167 = vector.broadcast %c6_i32 : i32 to vector<8x32xi32>
    %168 = arith.cmpi eq, %12, %167 : vector<8x32xi32>
    %169 = arith.select %168, %166, %147 : vector<8x32xi1>, vector<8x32xf32>
    %170 = arith.truncf %166 : vector<8x32xf32> to vector<8x32xbf16>
    %cst_28 = arith.constant dense<0.000000e+00> : vector<8x128xf32>
    %171 = tpu.matmul %170, %7, %cst_28 {dimension_numbers = #tpu.dot_dimension_numbers<[1], [0], [0], [1], [0, 0, 1, 1], [], []>} : vector<8x32xbf16>, vector<32x128xbf16>, vector<8x128xf32> -> vector<8x128xf32>
    %172 = vector.extract_strided_slice %6 {offsets = [56, 0], sizes = [8, 128], strides = [1, 1]} : vector<64x128xf32> to vector<8x128xf32>
    %173 = arith.addf %172, %171 : vector<8x128xf32>
    %174 = arith.negf %173 : vector<8x128xf32>
    %175 = math.exp %174 : vector<8x128xf32>
    %cst_29 = arith.constant 1.000000e+00 : f32
    %176 = vector.broadcast %cst_29 : f32 to vector<8x128xf32>
    %177 = arith.addf %176, %175 : vector<8x128xf32>
    %178 = arith.divf %176, %177 : vector<8x128xf32>
    %179 = math.tanh %173 : vector<8x128xf32>
    %180 = vector.extract_strided_slice %178 {offsets = [0, 0], sizes = [8, 32], strides = [1, 1]} : vector<8x128xf32> to vector<8x32xf32>
    %181 = vector.extract_strided_slice %178 {offsets = [0, 32], sizes = [8, 32], strides = [1, 1]} : vector<8x128xf32> to vector<8x32xf32>
    %182 = vector.extract_strided_slice %179 {offsets = [0, 64], sizes = [8, 32], strides = [1, 1]} : vector<8x128xf32> to vector<8x32xf32>
    %183 = vector.extract_strided_slice %178 {offsets = [0, 96], sizes = [8, 32], strides = [1, 1]} : vector<8x128xf32> to vector<8x32xf32>
    %184 = arith.mulf %181, %164 : vector<8x32xf32>
    %185 = arith.mulf %180, %182 : vector<8x32xf32>
    %186 = arith.addf %184, %185 : vector<8x32xf32>
    %187 = math.tanh %186 : vector<8x32xf32>
    %188 = arith.mulf %183, %187 : vector<8x32xf32>
    %c7_i32 = arith.constant 7 : i32
    %189 = vector.broadcast %c7_i32 : i32 to vector<8x32xi32>
    %190 = arith.cmpi eq, %12, %189 : vector<8x32xi32>
    %191 = arith.select %190, %188, %169 : vector<8x32xi1>, vector<8x32xf32>
    %192 = arith.truncf %191 : vector<8x32xf32> to vector<8x32xbf16>
    %c0_30 = arith.constant 0 : index
    %c0_31 = arith.constant 0 : index
    %193 = vector.load %arg6[%c0_30, %c0_31] : memref<32x64xbf16, #tpu.memory_space<vmem>>, vector<32x64xbf16>
    %cst_32 = arith.constant dense<0.000000e+00> : vector<8x64xf32>
    %194 = tpu.matmul %192, %193, %cst_32 {dimension_numbers = #tpu.dot_dimension_numbers<[1], [0], [0], [1], [0, 0, 1, 1], [], []>} : vector<8x32xbf16>, vector<32x64xbf16>, vector<8x64xf32> -> vector<8x64xf32>
    %c0_33 = arith.constant 0 : index
    %c0_34 = arith.constant 0 : index
    %195 = vector.load %arg7[%c0_33, %c0_34] : memref<1x64xf32, #tpu.memory_space<vmem>>, vector<1x64xf32>
    %196 = vector.broadcast %195 : vector<1x64xf32> to vector<8x64xf32>
    %197 = arith.addf %194, %196 : vector<8x64xf32>
    %cst_35 = arith.constant 0.000000e+00 : f32
    %198 = vector.broadcast %cst_35 : f32 to vector<8x64xf32>
    %199 = arith.maximumf %197, %198 : vector<8x64xf32>
    %200 = arith.truncf %199 : vector<8x64xf32> to vector<8x64xbf16>
    %c0_36 = arith.constant 0 : index
    %c0_37 = arith.constant 0 : index
    %201 = vector.load %arg8[%c0_36, %c0_37] : memref<64x128xbf16, #tpu.memory_space<vmem>>, vector<64x128xbf16>
    %cst_38 = arith.constant dense<0.000000e+00> : vector<8x128xf32>
    %202 = tpu.matmul %200, %201, %cst_38 {dimension_numbers = #tpu.dot_dimension_numbers<[1], [0], [0], [1], [0, 0, 1, 1], [], []>} : vector<8x64xbf16>, vector<64x128xbf16>, vector<8x128xf32> -> vector<8x128xf32>
    %c0_39 = arith.constant 0 : index
    %c0_40 = arith.constant 0 : index
    %203 = vector.load %arg9[%c0_39, %c0_40] : memref<1x128xf32, #tpu.memory_space<vmem>>, vector<1x128xf32>
    %204 = vector.broadcast %203 : vector<1x128xf32> to vector<8x128xf32>
    %205 = arith.addf %202, %204 : vector<8x128xf32>
    %cst_41 = arith.constant dense<0xFF800000> : vector<8xf32>
    %206 = vector.multi_reduction <maximumf>, %205, %cst_41 [1] : vector<8x128xf32> to vector<8xf32>
    %207 = vector.shape_cast %206 : vector<8xf32> to vector<8x1xf32>
    %208 = vector.broadcast %207 : vector<8x1xf32> to vector<8x128xf32>
    %209 = arith.subf %205, %208 : vector<8x128xf32>
    %210 = math.exp %209 : vector<8x128xf32>
    %cst_42 = arith.constant dense<0.000000e+00> : vector<8xf32>
    %211 = vector.multi_reduction <add>, %210, %cst_42 [1] : vector<8x128xf32> to vector<8xf32>
    %212 = vector.shape_cast %211 : vector<8xf32> to vector<8x1xf32>
    %213 = vector.broadcast %212 : vector<8x1xf32> to vector<8x128xf32>
    %214 = arith.divf %210, %213 : vector<8x128xf32>
    %c0_43 = arith.constant 0 : index
    %c0_44 = arith.constant 0 : index
    %215 = vector.load %arg10[%c0_43, %c0_44] : memref<8x128xf32, #tpu.memory_space<vmem>>, vector<8x128xf32>
    tpu.vector_store %arg10[%c0_43, %c0_44], %214 {strides = array<i32>} : memref<8x128xf32, #tpu.memory_space<vmem>>, vector<8x128xf32>,
    return
  }
  func.func @transform_0(%arg0: i32) -> (i32, i32) {
    %c0_i32 = arith.constant 0 : i32
    %c0_i32_0 = arith.constant 0 : i32
    return %arg0, %c0_i32 : i32, i32
  }
  func.func @transform_1(%arg0: i32) -> (i32, i32, i32) {
    %c0_i32 = arith.constant 0 : i32
    %c0_i32_0 = arith.constant 0 : i32
    %c0_i32_1 = arith.constant 0 : i32
    return %arg0, %c0_i32, %c0_i32_0 : i32, i32, i32
  }
  func.func @transform_2(%arg0: i32) -> (i32, i32) {
    %c0_i32 = arith.constant 0 : i32
    %c0_i32_0 = arith.constant 0 : i32
    %c0_i32_1 = arith.constant 0 : i32
    return %c0_i32, %c0_i32_0 : i32, i32
  }
  func.func @transform_3(%arg0: i32) -> (i32, i32) {
    %c0_i32 = arith.constant 0 : i32
    %c0_i32_0 = arith.constant 0 : i32
    %c0_i32_1 = arith.constant 0 : i32
    return %c0_i32, %c0_i32_0 : i32, i32
  }
  func.func @transform_4(%arg0: i32) -> (i32, i32) {
    %c0_i32 = arith.constant 0 : i32
    %c0_i32_0 = arith.constant 0 : i32
    %c0_i32_1 = arith.constant 0 : i32
    return %c0_i32, %c0_i32_0 : i32, i32
  }
  func.func @transform_5(%arg0: i32) -> (i32, i32) {
    %c0_i32 = arith.constant 0 : i32
    %c0_i32_0 = arith.constant 0 : i32
    %c0_i32_1 = arith.constant 0 : i32
    return %c0_i32, %c0_i32_0 : i32, i32
  }
  func.func @transform_6(%arg0: i32) -> (i32, i32) {
    %c0_i32 = arith.constant 0 : i32
    %c0_i32_0 = arith.constant 0 : i32
    %c0_i32_1 = arith.constant 0 : i32
    return %c0_i32, %c0_i32_0 : i32, i32
  }
  func.func @transform_7(%arg0: i32) -> (i32, i32) {
    %c0_i32 = arith.constant 0 : i32
    %c0_i32_0 = arith.constant 0 : i32
    %c0_i32_1 = arith.constant 0 : i32
    return %c0_i32, %c0_i32_0 : i32, i32
  }
  func.func @transform_8(%arg0: i32) -> (i32, i32) {
    %c0_i32 = arith.constant 0 : i32
    %c0_i32_0 = arith.constant 0 : i32
    %c0_i32_1 = arith.constant 0 : i32
    return %c0_i32, %c0_i32_0 : i32, i32
  }
  func.func @transform_9(%arg0: i32) -> (i32, i32) {
    %c0_i32 = arith.constant 0 : i32
    %c0_i32_0 = arith.constant 0 : i32
    return %arg0, %c0_i32 : i32, i32
  }
}

</mosaic_0001>

<llo_original>
// kernel: lstm_model_forward.1
$region0: #{lstm_model_forward.1}
  #allocation0 [shape = 'u32[]', space=smem, size = 0x4, offset = 0x4, fixed_abs, tag = 'smem constant byte address 0x4 - core index']
  #allocation1 [shape = 'u32[72,128]{1,0:T(1,128)}', space=vmem, size = 0x9000, scoped, tag = 'internal scratch']
  %s0 = inlined_call_operand.vmem [shape: s32[8,1], index: 0, kind: input, shape index: {}]
  %s1 = inlined_call_operand.vmem [shape: bf16[1,64,16], index: 1, kind: input, shape index: {}]
  %s2 = inlined_call_operand.vmem [shape: bf16[16,128], index: 2, kind: input, shape index: {}]
  %s3 = inlined_call_operand.vmem [shape: bf16[32,128], index: 3, kind: input, shape index: {}]
  %s4 = inlined_call_operand.vmem [shape: f32[1,128], index: 4, kind: input, shape index: {}]
  %s5 = inlined_call_operand.vmem [shape: bf16[32,64], index: 5, kind: input, shape index: {}]
  %s6 = inlined_call_operand.vmem [shape: f32[1,64], index: 6, kind: input, shape index: {}]
  %s7 = inlined_call_operand.vmem [shape: bf16[64,128], index: 7, kind: input, shape index: {}]
  %s8 = inlined_call_operand.vmem [shape: f32[1,128], index: 8, kind: input, shape index: {}]
  %s9 = inlined_call_operand.vmem [shape: f32[8,128], index: 9, kind: output, shape index: {}]
  %s10 = sld [smem:[#allocation0]]
  $region46: #{lstm_model_forward.1} parent=0
    _
  %s12 = ssub.s32 1, %s10
  %s13 = scalar_select 0, %s12, %s10
  // Predicated region
  $region2: #{lstm_model_forward.1} parent=0 // pred_check
    _
  $region3: #{lstm_model_forward.1} parent=0 // pred_check_branch
    %15 = sbr.rel (0) target = $region5
  $region4: #{lstm_model_forward.1} parent=0 // pred_region
    _
  $region5: #{lstm_model_forward.1} parent=0 // pred_fallthru
    _
  // Predicated region
  $region6: #{lstm_model_forward.1} parent=0 // pred_check
    _
  $region7: #{lstm_model_forward.1} parent=0 // pred_check_branch
    %17 = sbr.rel (0) target = $region9
  $region8: #{lstm_model_forward.1} parent=0 // pred_region
    _
  $region9: #{lstm_model_forward.1} parent=0 // pred_fallthru
    _
  // Predicated region
  $region10: #{lstm_model_forward.1} parent=0 // pred_check
    _
  $region11: #{lstm_model_forward.1} parent=0 // pred_check_branch
    %19 = sbr.rel (0) target = $region13
  $region12: #{lstm_model_forward.1} parent=0 // pred_region
    _
  $region13: #{lstm_model_forward.1} parent=0 // pred_fallthru
    _
  // Predicated region
  $region14: #{lstm_model_forward.1} parent=0 // pred_check
    _
  $region15: #{lstm_model_forward.1} parent=0 // pred_check_branch
    %21 = sbr.rel (0) target = $region17
  $region16: #{lstm_model_forward.1} parent=0 // pred_region
    _
  $region17: #{lstm_model_forward.1} parent=0 // pred_fallthru
    _
  // Predicated region
  $region18: #{lstm_model_forward.1} parent=0 // pred_check
    _
  $region19: #{lstm_model_forward.1} parent=0 // pred_check_branch
    %23 = sbr.rel (0) target = $region21
  $region20: #{lstm_model_forward.1} parent=0 // pred_region
    _
  $region21: #{lstm_model_forward.1} parent=0 // pred_fallthru
    _
  // Predicated region
  $region22: #{lstm_model_forward.1} parent=0 // pred_check
    _
  $region23: #{lstm_model_forward.1} parent=0 // pred_check_branch
    %25 = sbr.rel (0) target = $region25
  $region24: #{lstm_model_forward.1} parent=0 // pred_region
    _
  $region25: #{lstm_model_forward.1} parent=0 // pred_fallthru
    _
  // Predicated region
  $region26: #{lstm_model_forward.1} parent=0 // pred_check
    _
  $region27: #{lstm_model_forward.1} parent=0 // pred_check_branch
    %27 = sbr.rel (0) target = $region29
  $region28: #{lstm_model_forward.1} parent=0 // pred_region
    _
  $region29: #{lstm_model_forward.1} parent=0 // pred_fallthru
    _
  // Predicated region
  $region30: #{lstm_model_forward.1} parent=0 // pred_check
    _
  $region31: #{lstm_model_forward.1} parent=0 // pred_check_branch
    %29 = sbr.rel (0) target = $region33
  $region32: #{lstm_model_forward.1} parent=0 // pred_region
    _
  $region33: #{lstm_model_forward.1} parent=0 // pred_fallthru
    _
  // Predicated region
  $region34: #{lstm_model_forward.1} parent=0 // pred_check
    _
  $region35: #{lstm_model_forward.1} parent=0 // pred_check_branch
    %31 = sbr.rel (0) target = $region37
  $region36: #{lstm_model_forward.1} parent=0 // pred_region
    _
  $region37: #{lstm_model_forward.1} parent=0 // pred_fallthru
    _
  %v33 = vld [vmem:[%s1] sm:$0xf]
  %v34 = vld [vmem:[%s1 + $0x4] sm:$0xf]
  %v35 = vld [vmem:[%s1 + $0x8] sm:$0xf]
  %v36 = vld [vmem:[%s1 + $0xc] sm:$0xf]
  %v37 = vld [vmem:[%s1 + $0x10] sm:$0xf]
  %v38 = vld [vmem:[%s1 + $0x14] sm:$0xf]
  %v39 = vld [vmem:[%s1 + $0x18] sm:$0xf]
  %v40 = vld [vmem:[%s1 + $0x1c] sm:$0xf]
  %v41 = vld [vmem:[%s2] sm:$0xf]
  %v42 = vld [vmem:[%s2 + $0x4] sm:$0xf]
  %v43 = vld [vmem:[%s4] sm:$0x1]
  %v45 = vperm.slane %v43, 0
  %v55 = vunpack.c.l.b16 %v33
  %v56 = vunpack.c.l.b16 %v34
  %v57 = vunpack.c.l.b16 %v35
  %v58 = vunpack.c.l.b16 %v36
  %v59 = vunpack.c.l.b16 %v37
  %v60 = vunpack.c.l.b16 %v38
  %v61 = vunpack.c.l.b16 %v39
  %v62 = vunpack.c.l.b16 %v40
  %v63 = vpack.c.b16 %v56, %v55
  %v64 = vpack.c.b16 %v58, %v57
  %v65 = vpack.c.b16 %v60, %v59
  %v66 = vpack.c.b16 %v62, %v61
  %v69 = vunpack.c.l.b16 %v41
  %v70 = vunpack.c.l.b16 %v42
  %v71 = vpack.c.b16 %v70, %v69
  %vm73 = vcmask 130048
  %v75 = vsel %vm73, %v63, 0
  %v78 = vsel %vm73, %v64, 0
  %v81 = vsel %vm73, %v65, 0
  %v84 = vsel %vm73, %v66, 0
  %86 = vmatpush.bf16.msra.mxu0 0
  %87 = vmatpush.bf16.msra.mxu0 0
  %88 = vmatpush.bf16.msra.mxu0 0
  %89 = vmatpush.bf16.msra.mxu0 0
  %90 = vmatpush.bf16.msra.mxu0 0
  %91 = vmatpush.bf16.msra.mxu0 0
  %92 = vmatpush.bf16.msra.mxu0 0
  %93 = vmatpush.bf16.msra.mxu0 %v71
  %94 = vmatmul.bf16.gmra.mxu0 %v75
  %v95 = vpop.f32.mrf.mxu0
  %v96 = vadd.f32 %v45, %v95
  %v97 = vpop.f32.mrf.mxu0
  %v98 = vadd.f32 %v45, %v97
  %99 = vmatmul.bf16.gmra.mxu0 %v78
  %v100 = vpop.f32.mrf.mxu0
  %v101 = vadd.f32 %v45, %v100
  %v102 = vpop.f32.mrf.mxu0
  %v103 = vadd.f32 %v45, %v102
  %104 = vmatmul.bf16.gmra.mxu0 %v81
  %v105 = vpop.f32.mrf.mxu0
  %v106 = vadd.f32 %v45, %v105
  %v107 = vpop.f32.mrf.mxu0
  %v108 = vadd.f32 %v45, %v107
  %109 = vmatmul.bf16.gmra.mxu0 %v84
  %v110 = vpop.f32.mrf.mxu0
  %v111 = vadd.f32 %v45, %v110
  %v112 = vpop.f32.mrf.mxu0
  %v113 = vadd.f32 %v45, %v112
  %114 = vdwg.mxu0
  %v115 = vld [vmem:[%s3] sm:$0xf]
  %v116 = vld [vmem:[%s3 + $0x4] sm:$0xf]
  %v117 = vld [vmem:[%s3 + $0x8] sm:$0xf]
  %v118 = vld [vmem:[%s3 + $0xc] sm:$0xf]
  %v119 = vld [vmem:[%s0] sm:$0xff]
  %v120 = vsub.s32 %v119, 1
  %121 = vset.pattern.permute.xlu0 0
  %122 = vperm.xlu0 %121, %v120
  %v123 = vpop.permute.xlu0 %122
  %v128 = vunpack.c.l.b16 %v115
  %v129 = vunpack.c.l.b16 %v116
  %v130 = vunpack.c.l.b16 %v117
  %v131 = vunpack.c.l.b16 %v118
  %v132 = vpack.c.b16 %v129, %v128
  %v133 = vpack.c.b16 %v131, %v130
  %vm136 = vcmask 261120
  %v138 = vsel %vm136, 0, 0
  %140 = vmatpush.bf16.msra.mxu0 0
  %141 = vmatpush.bf16.msra.mxu0 0
  %142 = vmatpush.bf16.msra.mxu0 0
  %143 = vmatpush.bf16.msra.mxu0 0
  %144 = vmatpush.bf16.msra.mxu0 0
  %145 = vmatpush.bf16.msra.mxu0 0
  %146 = vmatpush.bf16.msra.mxu0 %v133
  %147 = vmatpush.bf16.msra.mxu0 %v132
  %148 = vmatmul.bf16.gmra.mxu0 %v138
  %v149 = vpop.f32.mrf.mxu0
  %v150 = vadd.f32 0.0, %v149
  %v151 = vpop.f32.mrf.mxu0
  %152 = vdwg.mxu0
  %v153 = vadd.f32 %v96, %v150
  %v154 = vxor.u32 %v153, 2147483648
  %v155 = vmul.f32 %v154, 1.442695
  %v156 = vpow.pop %v155
  %v157 = vadd.f32 %v156, 1.0
  %v158 = vrcp.pop %v157
  %v159 = vmul.f32 %v157, %v158
  %v160 = vsub.f32 1.0, %v159
  %v161 = vmul.f32 %v158, %v160
  %v162 = vadd.f32 %v158, %v161
  %vm163 = vweird.f32 %v157
  %vm164 = vweird.f32 %v158
  %vm165 = vmor %vm163, %vm164
  %v166 = vsel %vm165, %v158, %v162
  %v167 = vand.u32 2147483647, %v157
  %vm168 = vcmp.eq.f32.partialorder %v167, 8.507059e+37
  %v169 = vand.u32 %v157, 2147483648
  %v170 = vor.u32 1.1754944e-38, %v169
  %v171 = vsel %vm168, %v170, %v166
  %v172 = vmul.f32 1.0, %v171
  %v173 = vtanh.pop %v153
  %v174 = vmul.f32 %v172, 0.0
  %176 = vrot.lane.b32.xlu0 %v173, 64
  %v177 = vpop.permute.xlu0 %176
  %v179 = vmul.f32 %v172, %v177
  %181 = vrot.lane.b32.xlu0 %v179, 32
  %v182 = vpop.permute.xlu0 %181
  %v184 = vadd.f32 %v174, %v182
  %v185 = vtanh.pop %v184
  %187 = vrot.lane.b32.xlu0 %v185, 64
  %v188 = vpop.permute.xlu0 %187
  %v190 = vmul.f32 %v172, %v188
  %vm191 = vcmp.eq.s32.totalorder %v123, 0
  %v192 = vsel %vm191, %v190, 0.0
  %v193 = vpack.c.bf16 %v190, %v190
  %195 = vrot.lane.b32.xlu0 %v193, 32
  %v196 = vpop.permute.xlu0 %195
  %v198 = vsel %vm136, %v196, 0
  %200 = vmatpush.bf16.msra.mxu0 0
  %201 = vmatpush.bf16.msra.mxu0 0
  %202 = vmatpush.bf16.msra.mxu0 0
  %203 = vmatpush.bf16.msra.mxu0 0
  %204 = vmatpush.bf16.msra.mxu0 0
  %205 = vmatpush.bf16.msra.mxu0 0
  %206 = vmatpush.bf16.msra.mxu0 %v133
  %207 = vmatpush.bf16.msra.mxu0 %v132
  %208 = vmatmul.bf16.gmra.mxu0 %v198
  %v209 = vpop.f32.mrf.mxu0
  %v210 = vadd.f32 0.0, %v209
  %v211 = vpop.f32.mrf.mxu0
  %212 = vdwg.mxu0
  %v213 = vadd.f32 %v98, %v210
  %v214 = vxor.u32 %v213, 2147483648
  %v215 = vmul.f32 %v214, 1.442695
  %v216 = vpow.pop %v215
  %v217 = vadd.f32 %v216, 1.0
  %v218 = vrcp.pop %v217
  %v219 = vmul.f32 %v217, %v218
  %v220 = vsub.f32 1.0, %v219
  %v221 = vmul.f32 %v218, %v220
  %v222 = vadd.f32 %v218, %v221
  %vm223 = vweird.f32 %v217
  %vm224 = vweird.f32 %v218
  %vm225 = vmor %vm223, %vm224
  %v226 = vsel %vm225, %v218, %v222
  %v227 = vand.u32 2147483647, %v217
  %vm228 = vcmp.eq.f32.partialorder %v227, 8.507059e+37
  %v229 = vand.u32 %v217, 2147483648
  %v230 = vor.u32 1.1754944e-38, %v229
  %v231 = vsel %vm228, %v230, %v226
  %v232 = vmul.f32 1.0, %v231
  %v233 = vtanh.pop %v213
  %v234 = vmul.f32 %v232, %v184
  %236 = vrot.lane.b32.xlu0 %v233, 64
  %v237 = vpop.permute.xlu0 %236
  %v239 = vmul.f32 %v232, %v237
  %241 = vrot.lane.b32.xlu0 %v239, 32
  %v242 = vpop.permute.xlu0 %241
  %v244 = vadd.f32 %v234, %v242
  %v245 = vtanh.pop %v244
  %247 = vrot.lane.b32.xlu0 %v245, 64
  %v248 = vpop.permute.xlu0 %247
  %v250 = vmul.f32 %v232, %v248
  %vm251 = vcmp.eq.s32.totalorder %v123, 1
  %v252 = vsel %vm251, %v250, %v192
  %v253 = vpack.c.bf16 %v250, %v250
  %255 = vrot.lane.b32.xlu0 %v253, 32
  %v256 = vpop.permute.xlu0 %255
  %v258 = vsel %vm136, %v256, 0
  %260 = vmatpush.bf16.msra.mxu0 0
  %261 = vmatpush.bf16.msra.mxu0 0
  %262 = vmatpush.bf16.msra.mxu0 0
  %263 = vmatpush.bf16.msra.mxu0 0
  %264 = vmatpush.bf16.msra.mxu0 0
  %265 = vmatpush.bf16.msra.mxu0 0
  %266 = vmatpush.bf16.msra.mxu0 %v133
  %267 = vmatpush.bf16.msra.mxu0 %v132
  %268 = vmatmul.bf16.gmra.mxu0 %v258
  %v269 = vpop.f32.mrf.mxu0
  %v270 = vadd.f32 0.0, %v269
  %v271 = vpop.f32.mrf.mxu0
  %272 = vdwg.mxu0
  %v273 = vadd.f32 %v101, %v270
  %v274 = vxor.u32 %v273, 2147483648
  %v275 = vmul.f32 %v274, 1.442695
  %v276 = vpow.pop %v275
  %v277 = vadd.f32 %v276, 1.0
  %v278 = vrcp.pop %v277
  %v279 = vmul.f32 %v277, %v278
  %v280 = vsub.f32 1.0, %v279
  %v281 = vmul.f32 %v278, %v280
  %v282 = vadd.f32 %v278, %v281
  %vm283 = vweird.f32 %v277
  %vm284 = vweird.f32 %v278
  %vm285 = vmor %vm283, %vm284
  %v286 = vsel %vm285, %v278, %v282
  %v287 = vand.u32 2147483647, %v277
  %vm288 = vcmp.eq.f32.partialorder %v287, 8.507059e+37
  %v289 = vand.u32 %v277, 2147483648
  %v290 = vor.u32 1.1754944e-38, %v289
  %v291 = vsel %vm288, %v290, %v286
  %v292 = vmul.f32 1.0, %v291
  %v293 = vtanh.pop %v273
  %v294 = vmul.f32 %v292, %v244
  %296 = vrot.lane.b32.xlu0 %v293, 64
  %v297 = vpop.permute.xlu0 %296
  %v299 = vmul.f32 %v292, %v297
  %301 = vrot.lane.b32.xlu0 %v299, 32
  %v302 = vpop.permute.xlu0 %301
  %v304 = vadd.f32 %v294, %v302
  %v305 = vtanh.pop %v304
  %307 = vrot.lane.b32.xlu0 %v305, 64
  %v308 = vpop.permute.xlu0 %307
  %v310 = vmul.f32 %v292, %v308
  %vm311 = vcmp.eq.s32.totalorder %v123, 2
  %v312 = vsel %vm311, %v310, %v252
  %v313 = vpack.c.bf16 %v310, %v310
  %315 = vrot.lane.b32.xlu0 %v313, 32
  %v316 = vpop.permute.xlu0 %315
  %v318 = vsel %vm136, %v316, 0
  %320 = vmatpush.bf16.msra.mxu0 0
  %321 = vmatpush.bf16.msra.mxu0 0
  %322 = vmatpush.bf16.msra.mxu0 0
  %323 = vmatpush.bf16.msra.mxu0 0
  %324 = vmatpush.bf16.msra.mxu0 0
  %325 = vmatpush.bf16.msra.mxu0 0
  %326 = vmatpush.bf16.msra.mxu0 %v133
  %327 = vmatpush.bf16.msra.mxu0 %v132
  %328 = vmatmul.bf16.gmra.mxu0 %v318
  %v329 = vpop.f32.mrf.mxu0
  %v330 = vadd.f32 0.0, %v329
  %v331 = vpop.f32.mrf.mxu0
  %332 = vdwg.mxu0
  %v333 = vadd.f32 %v103, %v330
  %v334 = vxor.u32 %v333, 2147483648
  %v335 = vmul.f32 %v334, 1.442695
  %v336 = vpow.pop %v335
  %v337 = vadd.f32 %v336, 1.0
  %v338 = vrcp.pop %v337
  %v339 = vmul.f32 %v337, %v338
  %v340 = vsub.f32 1.0, %v339
  %v341 = vmul.f32 %v338, %v340
  %v342 = vadd.f32 %v338, %v341
  %vm343 = vweird.f32 %v337
  %vm344 = vweird.f32 %v338
  %vm345 = vmor %vm343, %vm344
  %v346 = vsel %vm345, %v338, %v342
  %v347 = vand.u32 2147483647, %v337
  %vm348 = vcmp.eq.f32.partialorder %v347, 8.507059e+37
  %v349 = vand.u32 %v337, 2147483648
  %v350 = vor.u32 1.1754944e-38, %v349
  %v351 = vsel %vm348, %v350, %v346
  %v352 = vmul.f32 1.0, %v351
  %v353 = vtanh.pop %v333
  %v354 = vmul.f32 %v352, %v304
  %356 = vrot.lane.b32.xlu0 %v353, 64
  %v357 = vpop.permute.xlu0 %356
  %v359 = vmul.f32 %v352, %v357
  %361 = vrot.lane.b32.xlu0 %v359, 32
  %v362 = vpop.permute.xlu0 %361
  %v364 = vadd.f32 %v354, %v362
  %v365 = vtanh.pop %v364
  %367 = vrot.lane.b32.xlu0 %v365, 64
  %v368 = vpop.permute.xlu0 %367
  %v370 = vmul.f32 %v352, %v368
  %vm371 = vcmp.eq.s32.totalorder %v123, 3
  %v372 = vsel %vm371, %v370, %v312
  %v373 = vpack.c.bf16 %v370, %v370
  %375 = vrot.lane.b32.xlu0 %v373, 32
  %v376 = vpop.permute.xlu0 %375
  %v378 = vsel %vm136, %v376, 0
  %380 = vmatpush.bf16.msra.mxu0 0
  %381 = vmatpush.bf16.msra.mxu0 0
  %382 = vmatpush.bf16.msra.mxu0 0
  %383 = vmatpush.bf16.msra.mxu0 0
  %384 = vmatpush.bf16.msra.mxu0 0
  %385 = vmatpush.bf16.msra.mxu0 0
  %386 = vmatpush.bf16.msra.mxu0 %v133
  %387 = vmatpush.bf16.msra.mxu0 %v132
  %388 = vmatmul.bf16.gmra.mxu0 %v378
  %v389 = vpop.f32.mrf.mxu0
  %v390 = vadd.f32 0.0, %v389
  %v391 = vpop.f32.mrf.mxu0
  %392 = vdwg.mxu0
  %v393 = vadd.f32 %v106, %v390
  %v394 = vxor.u32 %v393, 2147483648
  %v395 = vmul.f32 %v394, 1.442695
  %v396 = vpow.pop %v395
  %v397 = vadd.f32 %v396, 1.0
  %v398 = vrcp.pop %v397
  %v399 = vmul.f32 %v397, %v398
  %v400 = vsub.f32 1.0, %v399
  %v401 = vmul.f32 %v398, %v400
  %v402 = vadd.f32 %v398, %v401
  %vm403 = vweird.f32 %v397
  %vm404 = vweird.f32 %v398
  %vm405 = vmor %vm403, %vm404
  %v406 = vsel %vm405, %v398, %v402
  %v407 = vand.u32 2147483647, %v397
  %vm408 = vcmp.eq.f32.partialorder %v407, 8.507059e+37
  %v409 = vand.u32 %v397, 2147483648
  %v410 = vor.u32 1.1754944e-38, %v409
  %v411 = vsel %vm408, %v410, %v406
  %v412 = vmul.f32 1.0, %v411
  %v413 = vtanh.pop %v393
  %v414 = vmul.f32 %v412, %v364
  %416 = vrot.lane.b32.xlu0 %v413, 64
  %v417 = vpop.permute.xlu0 %416
  %v419 = vmul.f32 %v412, %v417
  %421 = vrot.lane.b32.xlu0 %v419, 32
  %v422 = vpop.permute.xlu0 %421
  %v424 = vadd.f32 %v414, %v422
  %v425 = vtanh.pop %v424
  %427 = vrot.lane.b32.xlu0 %v425, 64
  %v428 = vpop.permute.xlu0 %427
  %v430 = vmul.f32 %v412, %v428
  %vm431 = vcmp.eq.s32.totalorder %v123, 4
  %v432 = vsel %vm431, %v430, %v372
  %v433 = vpack.c.bf16 %v430, %v430
  %435 = vrot.lane.b32.xlu0 %v433, 32
  %v436 = vpop.permute.xlu0 %435
  %v438 = vsel %vm136, %v436, 0
  %440 = vmatpush.bf16.msra.mxu0 0
  %441 = vmatpush.bf16.msra.mxu0 0
  %442 = vmatpush.bf16.msra.mxu0 0
  %443 = vmatpush.bf16.msra.mxu0 0
  %444 = vmatpush.bf16.msra.mxu0 0
  %445 = vmatpush.bf16.msra.mxu0 0
  %446 = vmatpush.bf16.msra.mxu0 %v133
  %447 = vmatpush.bf16.msra.mxu0 %v132
  %448 = vmatmul.bf16.gmra.mxu0 %v438
  %v449 = vpop.f32.mrf.mxu0
  %v450 = vadd.f32 0.0, %v449
  %v451 = vpop.f32.mrf.mxu0
  %452 = vdwg.mxu0
  %v453 = vadd.f32 %v108, %v450
  %v454 = vxor.u32 %v453, 2147483648
  %v455 = vmul.f32 %v454, 1.442695
  %v456 = vpow.pop %v455
  %v457 = vadd.f32 %v456, 1.0
  %v458 = vrcp.pop %v457
  %v459 = vmul.f32 %v457, %v458
  %v460 = vsub.f32 1.0, %v459
  %v461 = vmul.f32 %v458, %v460
  %v462 = vadd.f32 %v458, %v461
  %vm463 = vweird.f32 %v457
  %vm464 = vweird.f32 %v458
  %vm465 = vmor %vm463, %vm464
  %v466 = vsel %vm465, %v458, %v462
  %v467 = vand.u32 2147483647, %v457
  %vm468 = vcmp.eq.f32.partialorder %v467, 8.507059e+37
  %v469 = vand.u32 %v457, 2147483648
  %v470 = vor.u32 1.1754944e-38, %v469
  %v471 = vsel %vm468, %v470, %v466
  %v472 = vmul.f32 1.0, %v471
  %v473 = vtanh.pop %v453
  %v474 = vmul.f32 %v472, %v424
  %476 = vrot.lane.b32.xlu0 %v473, 64
  %v477 = vpop.permute.xlu0 %476
  %v479 = vmul.f32 %v472, %v477
  %481 = vrot.lane.b32.xlu0 %v479, 32
  %v482 = vpop.permute.xlu0 %481
  %v484 = vadd.f32 %v474, %v482
  %v485 = vtanh.pop %v484
  %487 = vrot.lane.b32.xlu0 %v485, 64
  %v488 = vpop.permute.xlu0 %487
  %v490 = vmul.f32 %v472, %v488
  %vm491 = vcmp.eq.s32.totalorder %v123, 5
  %v492 = vsel %vm491, %v490, %v432
  %v493 = vpack.c.bf16 %v490, %v490
  %495 = vrot.lane.b32.xlu0 %v493, 32
  %v496 = vpop.permute.xlu0 %495
  %v498 = vsel %vm136, %v496, 0
  %500 = vmatpush.bf16.msra.mxu0 0
  %501 = vmatpush.bf16.msra.mxu0 0
  %502 = vmatpush.bf16.msra.mxu0 0
  %503 = vmatpush.bf16.msra.mxu0 0
  %504 = vmatpush.bf16.msra.mxu0 0
  %505 = vmatpush.bf16.msra.mxu0 0
  %506 = vmatpush.bf16.msra.mxu0 %v133
  %507 = vmatpush.bf16.msra.mxu0 %v132
  %508 = vmatmul.bf16.gmra.mxu0 %v498
  %v509 = vpop.f32.mrf.mxu0
  %v510 = vadd.f32 0.0, %v509
  %v511 = vpop.f32.mrf.mxu0
  %512 = vdwg.mxu0
  %v513 = vadd.f32 %v111, %v510
  %v514 = vxor.u32 %v513, 2147483648
  %v515 = vmul.f32 %v514, 1.442695
  %v516 = vpow.pop %v515
  %v517 = vadd.f32 %v516, 1.0
  %v518 = vrcp.pop %v517
  %v519 = vmul.f32 %v517, %v518
  %v520 = vsub.f32 1.0, %v519
  %v521 = vmul.f32 %v518, %v520
  %v522 = vadd.f32 %v518, %v521
  %vm523 = vweird.f32 %v517
  %vm524 = vweird.f32 %v518
  %vm525 = vmor %vm523, %vm524
  %v526 = vsel %vm525, %v518, %v522
  %v527 = vand.u32 2147483647, %v517
  %vm528 = vcmp.eq.f32.partialorder %v527, 8.507059e+37
  %v529 = vand.u32 %v517, 2147483648
  %v530 = vor.u32 1.1754944e-38, %v529
  %v531 = vsel %vm528, %v530, %v526
  %v532 = vmul.f32 1.0, %v531
  %v533 = vtanh.pop %v513
  %v534 = vmul.f32 %v532, %v484
  %536 = vrot.lane.b32.xlu0 %v533, 64
  %v537 = vpop.permute.xlu0 %536
  %v539 = vmul.f32 %v532, %v537
  %541 = vrot.lane.b32.xlu0 %v539, 32
  %v542 = vpop.permute.xlu0 %541
  %v544 = vadd.f32 %v534, %v542
  %v545 = vtanh.pop %v544
  %547 = vrot.lane.b32.xlu0 %v545, 64
  %v548 = vpop.permute.xlu0 %547
  %v550 = vmul.f32 %v532, %v548
  %vm551 = vcmp.eq.s32.totalorder %v123, 6
  %v552 = vsel %vm551, %v550, %v492
  %v553 = vpack.c.bf16 %v550, %v550
  %555 = vrot.lane.b32.xlu0 %v553, 32
  %v556 = vpop.permute.xlu0 %555
  %v558 = vsel %vm136, %v556, 0
  %560 = vmatpush.bf16.msra.mxu0 0
  %561 = vmatpush.bf16.msra.mxu0 0
  %562 = vmatpush.bf16.msra.mxu0 0
  %563 = vmatpush.bf16.msra.mxu0 0
  %564 = vmatpush.bf16.msra.mxu0 0
  %565 = vmatpush.bf16.msra.mxu0 0
  %566 = vmatpush.bf16.msra.mxu0 %v133
  %567 = vmatpush.bf16.msra.mxu0 %v132
  %568 = vmatmul.bf16.gmra.mxu0 %v558
  %v569 = vpop.f32.mrf.mxu0
  %v570 = vadd.f32 0.0, %v569
  %v571 = vpop.f32.mrf.mxu0
  %572 = vdwg.mxu0
  %v573 = vadd.f32 %v113, %v570
  %v574 = vxor.u32 %v573, 2147483648
  %v575 = vmul.f32 %v574, 1.442695
  %v576 = vpow.pop %v575
  %v577 = vadd.f32 %v576, 1.0
  %v578 = vrcp.pop %v577
  %v579 = vmul.f32 %v577, %v578
  %v580 = vsub.f32 1.0, %v579
  %v581 = vmul.f32 %v578, %v580
  %v582 = vadd.f32 %v578, %v581
  %vm583 = vweird.f32 %v577
  %vm584 = vweird.f32 %v578
  %vm585 = vmor %vm583, %vm584
  %v586 = vsel %vm585, %v578, %v582
  %v587 = vand.u32 2147483647, %v577
  %vm588 = vcmp.eq.f32.partialorder %v587, 8.507059e+37
  %v589 = vand.u32 %v577, 2147483648
  %v590 = vor.u32 1.1754944e-38, %v589
  %v591 = vsel %vm588, %v590, %v586
  %v592 = vmul.f32 1.0, %v591
  %v593 = vtanh.pop %v573
  %v594 = vmul.f32 %v592, %v544
  %596 = vrot.lane.b32.xlu0 %v593, 64
  %v597 = vpop.permute.xlu0 %596
  %v599 = vmul.f32 %v592, %v597
  %601 = vrot.lane.b32.xlu0 %v599, 32
  %v602 = vpop.permute.xlu0 %601
  %v604 = vadd.f32 %v594, %v602
  %v605 = vtanh.pop %v604
  %607 = vrot.lane.b32.xlu0 %v605, 64
  %v608 = vpop.permute.xlu0 %607
  %v610 = vmul.f32 %v592, %v608
  %vm611 = vcmp.eq.s32.totalorder %v123, 7
  %v612 = vsel %vm611, %v610, %v552
  %v613 = vpack.c.bf16 %v612, %v612
  %v614 = vld [vmem:[%s5] sm:$0xf]
  %v615 = vld [vmem:[%s5 + $0x4] sm:$0xf]
  %v616 = vld [vmem:[%s5 + $0x8] sm:$0xf]
  %v617 = vld [vmem:[%s5 + $0xc] sm:$0xf]
  %v618 = vld [vmem:[%s6] sm:$0x1]
  %v620 = vperm.slane %v618, 0
  %623 = vrot.lane.b32.xlu0 %v613, 32
  %v624 = vpop.permute.xlu0 %623
  %v629 = vunpack.c.l.b16 %v614
  %v630 = vunpack.c.l.b16 %v615
  %v631 = vunpack.c.l.b16 %v616
  %v632 = vunpack.c.l.b16 %v617
  %v633 = vpack.c.b16 %v630, %v629
  %v634 = vpack.c.b16 %v632, %v631
  %v638 = vsel %vm136, %v624, 0
  %640 = vmatpush.bf16.msra.mxu0 0
  %641 = vmatpush.bf16.msra.mxu0 0
  %642 = vmatpush.bf16.msra.mxu0 0
  %643 = vmatpush.bf16.msra.mxu0 0
  %644 = vmatpush.bf16.msra.mxu0 0
  %645 = vmatpush.bf16.msra.mxu0 0
  %646 = vmatpush.bf16.msra.mxu0 %v634
  %647 = vmatpush.bf16.msra.mxu0 %v633
  %648 = vmatmul.bf16.gmra.mxu0 %v638
  %v649 = vpop.f32.mrf.mxu0
  %v650 = vadd.f32 %v620, %v649
  %v651 = vpop.f32.mrf.mxu0
  %652 = vdwg.mxu0
  %v653 = vmax.f32 %v650, 0.0
  %v654 = vpack.c.bf16 %v653, %v653
  %v655 = vld [vmem:[%s7] sm:$0xf]
  %v656 = vld [vmem:[%s7 + $0x4] sm:$0xf]
  %v657 = vld [vmem:[%s7 + $0x8] sm:$0xf]
  %v658 = vld [vmem:[%s7 + $0xc] sm:$0xf]
  %v659 = vld [vmem:[%s7 + $0x10] sm:$0xf]
  %v660 = vld [vmem:[%s7 + $0x14] sm:$0xf]
  %v661 = vld [vmem:[%s7 + $0x18] sm:$0xf]
  %v662 = vld [vmem:[%s7 + $0x1c] sm:$0xf]
  %v663 = vld [vmem:[%s8] sm:$0x1]
  %v665 = vperm.slane %v663, 0
  %v675 = vunpack.c.l.b16 %v655
  %v676 = vunpack.c.l.b16 %v656
  %v677 = vunpack.c.l.b16 %v657
  %v678 = vunpack.c.l.b16 %v658
  %v679 = vunpack.c.l.b16 %v659
  %v680 = vunpack.c.l.b16 %v660
  %v681 = vunpack.c.l.b16 %v661
  %v682 = vunpack.c.l.b16 %v662
  %v683 = vpack.c.b16 %v676, %v675
  %v684 = vpack.c.b16 %v678, %v677
  %v685 = vpack.c.b16 %v680, %v679
  %v686 = vpack.c.b16 %v682, %v681
  %vm691 = vcmask 523264
  %v693 = vsel %vm691, %v654, 0
  %695 = vmatpush.bf16.msra.mxu0 0
  %696 = vmatpush.bf16.msra.mxu0 0
  %697 = vmatpush.bf16.msra.mxu0 0
  %698 = vmatpush.bf16.msra.mxu0 0
  %699 = vmatpush.bf16.msra.mxu0 %v686
  %700 = vmatpush.bf16.msra.mxu0 %v685
  %701 = vmatpush.bf16.msra.mxu0 %v684
  %702 = vmatpush.bf16.msra.mxu0 %v683
  %703 = vmatmul.bf16.gmra.mxu0 %v693
  %v704 = vpop.f32.mrf.mxu0
  %v705 = vadd.f32 %v665, %v704
  %v706 = vpop.f32.mrf.mxu0
  %707 = vdwg.mxu0
  %708 = vmax.xlane.f32.xlu0 %v705
  %v709 = vpop.xlane.xlu0 %708
  %v710 = vsub.f32 %v705, %v709
  %v711 = vmul.f32 %v710, 1.442695
  %v712 = vpow.pop %v711
  %713 = vadd.xlane.f32.xlu0 %v712
  %v714 = vpop.xlane.xlu0 %713
  %v715 = vrcp.pop %v714
  %v716 = vmul.f32 %v714, %v715
  %v717 = vsub.f32 1.0, %v716
  %v718 = vmul.f32 %v715, %v717
  %v719 = vadd.f32 %v715, %v718
  %vm720 = vweird.f32 %v714
  %vm721 = vweird.f32 %v715
  %vm722 = vmor %vm720, %vm721
  %v723 = vsel %vm722, %v715, %v719
  %v724 = vand.u32 2147483647, %v714
  %vm725 = vcmp.eq.f32.partialorder %v724, 8.507059e+37
  %v726 = vand.u32 %v714, 2147483648
  %v727 = vor.u32 1.1754944e-38, %v726
  %v728 = vsel %vm725, %v727, %v723
  %v729 = vmul.f32 %v712, %v728
  %730 = vst [vmem:[%s9] sm:$0xff] %v729
  // Predicated region
  $region38: #{lstm_model_forward.1} parent=0 // pred_check
    _
  $region39: #{lstm_model_forward.1} parent=0 // pred_check_branch
    %732 = sbr.rel (0) target = $region41
  $region40: #{lstm_model_forward.1} parent=0 // pred_region
    _
  $region41: #{lstm_model_forward.1} parent=0 // pred_fallthru
    _
  // Predicated region
  $region42: #{lstm_model_forward.1} parent=0 // pred_check
    _
  $region43: #{lstm_model_forward.1} parent=0 // pred_check_branch
    %734 = sbr.rel (0) target = $region45
  $region44: #{lstm_model_forward.1} parent=0 // pred_region
    _
  $region45: #{lstm_model_forward.1} parent=0 // pred_fallthru
    _

</llo_original>
